<compile_context>
chip_gen: v7x
topology: tpu7x:2x2x1
jax: 0.10.0
libtpu: 0.0.40
codegen_flags: <defaults>
</compile_context>

<pallas_src>
import jax
import jax.numpy as jnp
from jax.experimental import pallas as pl
from jax.experimental.pallas import tpu as pltpu

D_IN = 512
OUT1 = 2        # fc1: Linear(512, 2)
OUT2 = 100      # fc ("fc2"): Linear(512, 100)
FUSED_N = 128   # OUT1 + OUT2 = 102, padded to one full 128-lane tile


def _round_up(x, m):
    return (x + m - 1) // m * m


def _fused_heads_kernel(x_ref, w_ref, b_ref, o_ref):
    """One fused matmul for both heads; sigmoid only on fc2's lanes."""
    x = x_ref[...]
    if x.dtype != w_ref.dtype:
        x = x.astype(w_ref.dtype)           # in-kernel cast (no extra HBM pass)
    y = jnp.dot(x, w_ref[...], preferred_element_type=jnp.float32)
    y = y + b_ref[...]                      # f32 epilogue (v5e-safe)
    lane = jax.lax.broadcasted_iota(jnp.int32, y.shape, 1)
    sig_mask = (lane >= OUT1) & (lane < OUT1 + OUT2)   # lanes 2..101 -> sigmoid
    o_ref[...] = jnp.where(sig_mask, jax.nn.sigmoid(y), y).astype(o_ref.dtype)


def make_fused_params(w1, b1, w2, b2, *, compute_dtype=jnp.bfloat16):
    """Build the fused [512, 128] weight and [1, 128] bias ONCE (hoisted).

    w1: [OUT1, D_IN], w2: [OUT2, D_IN]  (PyTorch nn.Linear layout, [out, in]).
    b1: [OUT1], b2: [OUT2].
    """
    w = jnp.zeros((D_IN, FUSED_N), compute_dtype)
    w = w.at[:, :OUT1].set(w1.T.astype(compute_dtype))
    w = w.at[:, OUT1:OUT1 + OUT2].set(w2.T.astype(compute_dtype))
    b = jnp.zeros((1, FUSED_N), jnp.float32)
    b = b.at[0, :OUT1].set(b1.astype(jnp.float32))
    b = b.at[0, OUT1:OUT1 + OUT2].set(b2.astype(jnp.float32))
    return w, b


def inception_v3_heads(x, fused_w, fused_b, *, out_dtype=jnp.float32,
                       min_pallas_batch=0):
    """x: [B, 512]; fused_w/fused_b from make_fused_params()."""
    B = x.shape[0]

    if B < min_pallas_batch:
        # Small-batch fallback: below a few hundred rows the pallas_call fixed
        # overhead dominates; let XLA fuse the fused dot directly.
        y = jnp.dot(x.astype(fused_w.dtype), fused_w,
                    preferred_element_type=jnp.float32) + fused_b
        label1 = y[:, :OUT1].astype(out_dtype)
        label2 = jax.nn.sigmoid(y[:, OUT1:OUT1 + OUT2]).astype(out_dtype)
        return {"label1": label1, "label2": label2}

    # Batch tile: large (amortizes ~0.35 us/step + big DMAs) but clamped so the
    # grid keeps >=2 steps when possible (engages v7x's 2nd TensorCore), and
    # never much larger than B itself. Multiple of 16 (bf16 sublane packing).
    tile_b = min(2048,
                 _round_up(pl.cdiv(B, 2), 128),
                 _round_up(B, 16))
    tile_b = max(tile_b, 16)
    grid = pl.cdiv(B, tile_b)               # partial last block handled by Pallas

    fused = pl.pallas_call(
        _fused_heads_kernel,
        out_shape=jax.ShapeDtypeStruct((B, FUSED_N), out_dtype),
        grid_spec=pltpu.PrefetchScalarGridSpec(
            num_scalar_prefetch=0,
            grid=(grid,),
            in_specs=[
                pl.BlockSpec((tile_b, D_IN), lambda i: (i, 0)),    # streamed x
                pl.BlockSpec((D_IN, FUSED_N), lambda i: (0, 0)),   # resident W
                pl.BlockSpec((1, FUSED_N), lambda i: (0, 0)),      # resident b
            ],
            out_specs=pl.BlockSpec((tile_b, FUSED_N), lambda i: (i, 0)),
        ),
        compiler_params=pltpu.CompilerParams(
            dimension_semantics=("parallel",),   # shard batch across TCs (v7x)
            vmem_limit_bytes=32 * 1024 * 1024,   # <=~10.5 MiB footprint at 2048
        ),
    )(x, fused_w, fused_b)

    # Cheap views; keep the whole wrapper under the consumer's jit so these
    # fuse with the kernel output instead of materializing extra HBM passes.
    label1 = fused[:, :OUT1]
    label2 = fused[:, OUT1:OUT1 + OUT2]
    return {"label1": label1, "label2": label2}


if __name__ == "__main__":
    key = jax.random.PRNGKey(0)
    kx, k1, k2, k3, k4 = jax.random.split(key, 5)
    bound = 1.0 / jnp.sqrt(jnp.float32(D_IN))

    # Round weights/inputs through bf16 so the kernel's bf16 compute is
    # lossless and the f32 reference comparison below is tight.
    def bf16_round(a):
        return a.astype(jnp.bfloat16).astype(jnp.float32)

    # PyTorch nn.Linear layout: weight [out, in], bias [out].
    w1 = bf16_round(jax.random.uniform(k1, (OUT1, D_IN), jnp.float32, -bound, bound))
    b1 = jax.random.uniform(k2, (OUT1,), jnp.float32, -bound, bound)
    w2 = bf16_round(jax.random.uniform(k3, (OUT2, D_IN), jnp.float32, -bound, bound))
    b2 = jax.random.uniform(k4, (OUT2,), jnp.float32, -bound, bound)

    # Built once, reused across calls (hoisted out of the per-forward path).
    fused_w, fused_b = make_fused_params(w1, b1, w2, b2)

    forward = jax.jit(inception_v3_heads)   # output slices fuse with the kernel

    # B=2: the module's nominal small batch. B=1000: exercises a multi-step
    # grid (2 steps of 512 rows) with a partial, OOB-padded last block.
    for B in (2, 1000):
        x = bf16_round(jax.random.normal(jax.random.fold_in(kx, B),
                                         (B, D_IN), jnp.float32))
        out = forward(x, fused_w, fused_b)
        jax.block_until_ready(out)

        # Pure-JAX reference check.
        ref1 = x @ w1.T + b1
        ref2 = jax.nn.sigmoid(x @ w2.T + b2)
        assert out["label1"].shape == (B, OUT1)
        assert out["label2"].shape == (B, OUT2)
        assert jnp.allclose(out["label1"], ref1, atol=2e-3, rtol=2e-3)
        assert jnp.allclose(out["label2"], ref2, atol=2e-3, rtol=2e-3)

    print("KERNEL_OK")
</pallas_src>

<mosaic_0001>
module attributes {stable_mosaic.version = 11 : i64} {
  func.func @_fused_heads_kernel(%arg0: i32, %arg1: memref<16x512xf32, #tpu.memory_space<vmem>>, %arg2: memref<512x128xbf16, #tpu.memory_space<vmem>>, %arg3: memref<1x128xf32, #tpu.memory_space<vmem>>, %arg4: memref<16x128xf32, #tpu.memory_space<vmem>>) attributes {dimension_semantics = [#tpu.dimension_semantics<parallel>], iteration_bounds = array<i64: 1>, scalar_prefetch = 0 : i64, scratch_operands = 0 : i64, tpu.core_type = #tpu.core_type<tc>, window_params = [{transform_indices = @transform_0, window_bounds = array<i64: 16, 512>}, {pipeline_mode = #tpu.pipeline_mode<synchronous>, transform_indices = @transform_1, window_bounds = array<i64: 512, 128>}, {pipeline_mode = #tpu.pipeline_mode<synchronous>, transform_indices = @transform_2, window_bounds = array<i64: 1, 128>}, {transform_indices = @transform_3, window_bounds = array<i64: 16, 128>}]} {
    %c0 = arith.constant 0 : index
    %c0_0 = arith.constant 0 : index
    %0 = vector.load %arg1[%c0, %c0_0] : memref<16x512xf32, #tpu.memory_space<vmem>>, vector<16x512xf32>
    %1 = arith.truncf %0 : vector<16x512xf32> to vector<16x512xbf16>
    %c0_1 = arith.constant 0 : index
    %c0_2 = arith.constant 0 : index
    %2 = vector.load %arg2[%c0_1, %c0_2] : memref<512x128xbf16, #tpu.memory_space<vmem>>, vector<512x128xbf16>
    %cst = arith.constant dense<0.000000e+00> : vector<16x128xf32>
    %3 = tpu.matmul %1, %2, %cst {dimension_numbers = #tpu.dot_dimension_numbers<[1], [0], [0], [1], [0, 0, 1, 1], [], []>} : vector<16x512xbf16>, vector<512x128xbf16>, vector<16x128xf32> -> vector<16x128xf32>
    %c0_3 = arith.constant 0 : index
    %c0_4 = arith.constant 0 : index
    %4 = vector.load %arg3[%c0_3, %c0_4] : memref<1x128xf32, #tpu.memory_space<vmem>>, vector<1x128xf32>
    %5 = vector.broadcast %4 : vector<1x128xf32> to vector<16x128xf32>
    %6 = arith.addf %3, %5 : vector<16x128xf32>
    %7 = tpu.iota {dimensions = array<i32: 1>} : vector<16x128xi32>
    %c2_i32 = arith.constant 2 : i32
    %8 = vector.broadcast %c2_i32 : i32 to vector<16x128xi32>
    %9 = arith.cmpi sge, %7, %8 : vector<16x128xi32>
    %c102_i32 = arith.constant 102 : i32
    %10 = vector.broadcast %c102_i32 : i32 to vector<16x128xi32>
    %11 = arith.cmpi slt, %7, %10 : vector<16x128xi32>
    %12 = arith.andi %9, %11 : vector<16x128xi1>
    %13 = arith.negf %6 : vector<16x128xf32>
    %14 = math.exp %13 : vector<16x128xf32>
    %cst_5 = arith.constant 1.000000e+00 : f32
    %15 = vector.broadcast %cst_5 : f32 to vector<16x128xf32>
    %16 = arith.addf %15, %14 : vector<16x128xf32>
    %17 = arith.divf %15, %16 : vector<16x128xf32>
    %18 = arith.select %12, %17, %6 : vector<16x128xi1>, vector<16x128xf32>
    %c0_6 = arith.constant 0 : index
    %c0_7 = arith.constant 0 : index
    %19 = vector.load %arg4[%c0_6, %c0_7] : memref<16x128xf32, #tpu.memory_space<vmem>>, vector<16x128xf32>
    tpu.vector_store %arg4[%c0_6, %c0_7], %18 {strides = array<i32>} : memref<16x128xf32, #tpu.memory_space<vmem>>, vector<16x128xf32>,
    return
  }
  func.func @transform_0(%arg0: i32) -> (i32, i32) {
    %c0_i32 = arith.constant 0 : i32
    %c0_i32_0 = arith.constant 0 : i32
    return %arg0, %c0_i32 : i32, i32
  }
  func.func @transform_1(%arg0: i32) -> (i32, i32) {
    %c0_i32 = arith.constant 0 : i32
    %c0_i32_0 = arith.constant 0 : i32
    %c0_i32_1 = arith.constant 0 : i32
    return %c0_i32, %c0_i32_0 : i32, i32
  }
  func.func @transform_2(%arg0: i32) -> (i32, i32) {
    %c0_i32 = arith.constant 0 : i32
    %c0_i32_0 = arith.constant 0 : i32
    %c0_i32_1 = arith.constant 0 : i32
    return %c0_i32, %c0_i32_0 : i32, i32
  }
  func.func @transform_3(%arg0: i32) -> (i32, i32) {
    %c0_i32 = arith.constant 0 : i32
    %c0_i32_0 = arith.constant 0 : i32
    return %arg0, %c0_i32 : i32, i32
  }
}

</mosaic_0001>

<llo_original>
// kernel: inception_v3_heads.1
$region0: #{inception_v3_heads.1}
  #allocation0 [shape = 'u32[]', space=smem, size = 0x4, offset = 0x4, fixed_abs, tag = 'smem constant byte address 0x4 - core index']
  #allocation1 [shape = 'u32[144,128]{1,0:T(1,128)}', space=vmem, size = 0x12000, scoped, tag = 'internal scratch']
  %s0 = inlined_call_operand.hbm [shape: f32[2,512], index: 0, kind: input, shape index: {}]
  %s1 = inlined_call_operand.hbm [shape: bf16[512,128], index: 1, kind: input, shape index: {}]
  %s2 = inlined_call_operand.vmem [shape: f32[1,128], index: 2, kind: input, shape index: {}]
  %s3 = inlined_call_operand.vmem [shape: f32[2,128], index: 3, kind: output, shape index: {}]
  %s4 = sld [smem:[#allocation0]]
  $region60: #{inception_v3_heads.1} parent=0
    _
  %s6 = ssub.s32 1, %s4
  %s7 = scalar_select 0, %s6, %s4
  $region1: #{inception_v3_heads.1} parent=0
    #allocation2 [shape = 'u8[32768]{0}', space=vmem, size = 0x8000, scoped, tag = 'input window, operand 0, single buffered']
    #allocation3 [shape = 's32[1]{0}', space=sflag, size = 0x4, scoped, tag = 'scoped memory for inception_v3_heads.1']
    #allocation4 [shape = 'u8[131072]{0}', space=vmem, size = 0x20000, scoped, tag = 'input window, operand 1, single buffered']
    #allocation5 [shape = 's32[1]{0}', space=sflag, size = 0x4, scoped, tag = 'scoped memory for inception_v3_heads.1']
    #allocation6 [shape = 'u8[8192]{0}', space=vmem, size = 0x2000, scoped, tag = 'output window, operand 0, single buffered']
    %8 = vsyncpa [#allocation3], 0
    %9 = vsyncpa [#allocation5], 0
    // Predicated region
    $region2: #{inception_v3_heads.1} parent=1 // pred_check
      _
    $region3: #{inception_v3_heads.1} parent=1 // pred_check_branch
      %11 = sbr.rel (0) target = $region5
    $region4: #{inception_v3_heads.1} parent=1 // pred_region
      %s13 = ssub.s32 1024, 128
      %14 = vsyncadd [#allocation3], %s13
      %s15 = sshll.u32 [#allocation2], 4
      %s16 = int_to_ptr.vmem [resolvable:$true] %s15
      %21 = dma.hbm_to_vmem [thread:$0]  %s0, 128, %s16, [#allocation3], 128, 128, 8
    $region5: #{inception_v3_heads.1} parent=1 // pred_fallthru
      _
    // Predicated region
    $region6: #{inception_v3_heads.1} parent=1 // pred_check
      _
    $region7: #{inception_v3_heads.1} parent=1 // pred_check_branch
      %23 = sbr.rel (0) target = $region9
    $region8: #{inception_v3_heads.1} parent=1 // pred_region
      %s25 = ssub.s32 4096, 4096
      %26 = vsyncadd [#allocation5], %s25
      %s27 = sshll.u32 [#allocation4], 4
      %s28 = int_to_ptr.vmem [resolvable:$true] %s27
      %33 = dma.hbm_to_vmem [thread:$0]  %s1, 4096, %s28, [#allocation5], 64, 64, 4
    $region9: #{inception_v3_heads.1} parent=1 // pred_fallthru
      _
    // Predicated region
    $region10: #{inception_v3_heads.1} parent=1 // pred_check
      _
    $region11: #{inception_v3_heads.1} parent=1 // pred_check_branch
      %35 = sbr.rel (0) target = $region13
    $region12: #{inception_v3_heads.1} parent=1 // pred_region
      _
    $region13: #{inception_v3_heads.1} parent=1 // pred_fallthru
      _
    // Predicated region
    $region14: #{inception_v3_heads.1} parent=1 // pred_check
      _
    $region15: #{inception_v3_heads.1} parent=1 // pred_check_branch
      %37 = sbr.rel (0) target = $region17
    $region16: #{inception_v3_heads.1} parent=1 // pred_region
      %38 = dma.done [#allocation3], 1024
    $region17: #{inception_v3_heads.1} parent=1 // pred_fallthru
      _
    // Predicated region
    $region18: #{inception_v3_heads.1} parent=1 // pred_check
      _
    $region19: #{inception_v3_heads.1} parent=1 // pred_check_branch
      %40 = sbr.rel (0) target = $region21
    $region20: #{inception_v3_heads.1} parent=1 // pred_region
      %41 = dma.done [#allocation5], 4096
    $region21: #{inception_v3_heads.1} parent=1 // pred_fallthru
      _
    %v43 = vld [vmem:[#allocation2] sm:$0xff]
    %v44 = vld [vmem:[#allocation2 + $0x8] sm:$0xff]
    %v45 = vld [vmem:[#allocation2 + $0x10] sm:$0xff]
    %v46 = vld [vmem:[#allocation2 + $0x18] sm:$0xff]
    %v47 = vld [vmem:[#allocation2 + $0x20] sm:$0xff]
    %v48 = vld [vmem:[#allocation2 + $0x28] sm:$0xff]
    %v49 = vld [vmem:[#allocation2 + $0x30] sm:$0xff]
    %v50 = vld [vmem:[#allocation2 + $0x38] sm:$0xff]
    %v59 = vcombine.low %v43, %v44
    %v60 = vcombine.high %v43, %v44
    %v61 = vcombine.low %v45, %v46
    %v62 = vcombine.high %v45, %v46
    %v64 = vunpack.c.l.s4 1983009808
    %v65 = vunpack.c.0.s8 %v64
    %v66 = vlaneseq
    %v67 = vshrl.u32 %v66, 7
    %v68 = vsub.s32 %v65, %v67
    %v69 = vrot.slane %v59, %v68
    %v71 = vunpack.c.l.s4 1983009808
    %v72 = vunpack.c.0.s8 %v71
    %v73 = vlaneseq
    %v74 = vshrl.u32 %v73, 7
    %v75 = vsub.s32 %v72, %v74
    %v76 = vrot.slane %v60, %v75
    %v78 = vunpack.c.l.s4 1983009808
    %v79 = vunpack.c.0.s8 %v78
    %v80 = vlaneseq
    %v81 = vshrl.u32 %v80, 7
    %v82 = vsub.s32 %v79, %v81
    %v83 = vrot.slane %v61, %v82
    %v85 = vunpack.c.l.s4 1983009808
    %v86 = vunpack.c.0.s8 %v85
    %v87 = vlaneseq
    %v88 = vshrl.u32 %v87, 7
    %v89 = vsub.s32 %v86, %v88
    %v90 = vrot.slane %v62, %v89
    %v91 = vcombine.low %v69, %v83
    %v92 = vcombine.high %v69, %v83
    %v93 = vcombine.low %v76, %v90
    %v94 = vcombine.high %v76, %v90
    %v95 = vcombine.low %v47, %v48
    %v96 = vcombine.high %v47, %v48
    %v97 = vcombine.low %v49, %v50
    %v98 = vcombine.high %v49, %v50
    %v100 = vunpack.c.l.s4 1983009808
    %v101 = vunpack.c.0.s8 %v100
    %v102 = vlaneseq
    %v103 = vshrl.u32 %v102, 7
    %v104 = vsub.s32 %v101, %v103
    %v105 = vrot.slane %v95, %v104
    %v107 = vunpack.c.l.s4 1983009808
    %v108 = vunpack.c.0.s8 %v107
    %v109 = vlaneseq
    %v110 = vshrl.u32 %v109, 7
    %v111 = vsub.s32 %v108, %v110
    %v112 = vrot.slane %v96, %v111
    %v114 = vunpack.c.l.s4 1983009808
    %v115 = vunpack.c.0.s8 %v114
    %v116 = vlaneseq
    %v117 = vshrl.u32 %v116, 7
    %v118 = vsub.s32 %v115, %v117
    %v119 = vrot.slane %v97, %v118
    %v121 = vunpack.c.l.s4 1983009808
    %v122 = vunpack.c.0.s8 %v121
    %v123 = vlaneseq
    %v124 = vshrl.u32 %v123, 7
    %v125 = vsub.s32 %v122, %v124
    %v126 = vrot.slane %v98, %v125
    %v127 = vcombine.low %v105, %v119
    %v128 = vcombine.high %v105, %v119
    %v129 = vcombine.low %v112, %v126
    %v130 = vcombine.high %v112, %v126
    %v139 = vpack.c.bf16 %v127, %v91
    %v140 = vpack.c.bf16 %v128, %v92
    %v141 = vpack.c.bf16 %v129, %v93
    %v142 = vpack.c.bf16 %v130, %v94
    %v143 = vld [vmem:[#allocation4] sm:$0xf]
    %v144 = vld [vmem:[#allocation4 + $0x4] sm:$0xf]
    %v145 = vld [vmem:[#allocation4 + $0x8] sm:$0xf]
    %v146 = vld [vmem:[#allocation4 + $0xc] sm:$0xf]
    %v147 = vld [vmem:[#allocation4 + $0x10] sm:$0xf]
    %v148 = vld [vmem:[#allocation4 + $0x14] sm:$0xf]
    %v149 = vld [vmem:[#allocation4 + $0x18] sm:$0xf]
    %v150 = vld [vmem:[#allocation4 + $0x1c] sm:$0xf]
    %v151 = vld [vmem:[#allocation4 + $0x20] sm:$0xf]
    %v152 = vld [vmem:[#allocation4 + $0x24] sm:$0xf]
    %v153 = vld [vmem:[#allocation4 + $0x28] sm:$0xf]
    %v154 = vld [vmem:[#allocation4 + $0x2c] sm:$0xf]
    %v155 = vld [vmem:[#allocation4 + $0x30] sm:$0xf]
    %v156 = vld [vmem:[#allocation4 + $0x34] sm:$0xf]
    %v157 = vld [vmem:[#allocation4 + $0x38] sm:$0xf]
    %v158 = vld [vmem:[#allocation4 + $0x3c] sm:$0xf]
    %v159 = vld [vmem:[#allocation4 + $0x40] sm:$0xf]
    %v160 = vld [vmem:[#allocation4 + $0x44] sm:$0xf]
    %v161 = vld [vmem:[#allocation4 + $0x48] sm:$0xf]
    %v162 = vld [vmem:[#allocation4 + $0x4c] sm:$0xf]
    %v163 = vld [vmem:[#allocation4 + $0x50] sm:$0xf]
    %v164 = vld [vmem:[#allocation4 + $0x54] sm:$0xf]
    %v165 = vld [vmem:[#allocation4 + $0x58] sm:$0xf]
    %v166 = vld [vmem:[#allocation4 + $0x5c] sm:$0xf]
    %v167 = vld [vmem:[#allocation4 + $0x60] sm:$0xf]
    %v168 = vld [vmem:[#allocation4 + $0x64] sm:$0xf]
    %v169 = vld [vmem:[#allocation4 + $0x68] sm:$0xf]
    %v170 = vld [vmem:[#allocation4 + $0x6c] sm:$0xf]
    %v171 = vld [vmem:[#allocation4 + $0x70] sm:$0xf]
    %v172 = vld [vmem:[#allocation4 + $0x74] sm:$0xf]
    %v173 = vld [vmem:[#allocation4 + $0x78] sm:$0xf]
    %v174 = vld [vmem:[#allocation4 + $0x7c] sm:$0xf]
    %v175 = vld [vmem:[#allocation4 + $0x80] sm:$0xf]
    %v176 = vld [vmem:[#allocation4 + $0x84] sm:$0xf]
    %v177 = vld [vmem:[#allocation4 + $0x88] sm:$0xf]
    %v178 = vld [vmem:[#allocation4 + $0x8c] sm:$0xf]
    %v179 = vld [vmem:[#allocation4 + $0x90] sm:$0xf]
    %v180 = vld [vmem:[#allocation4 + $0x94] sm:$0xf]
    %v181 = vld [vmem:[#allocation4 + $0x98] sm:$0xf]
    %v182 = vld [vmem:[#allocation4 + $0x9c] sm:$0xf]
    %v183 = vld [vmem:[#allocation4 + $0xa0] sm:$0xf]
    %v184 = vld [vmem:[#allocation4 + $0xa4] sm:$0xf]
    %v185 = vld [vmem:[#allocation4 + $0xa8] sm:$0xf]
    %v186 = vld [vmem:[#allocation4 + $0xac] sm:$0xf]
    %v187 = vld [vmem:[#allocation4 + $0xb0] sm:$0xf]
    %v188 = vld [vmem:[#allocation4 + $0xb4] sm:$0xf]
    %v189 = vld [vmem:[#allocation4 + $0xb8] sm:$0xf]
    %v190 = vld [vmem:[#allocation4 + $0xbc] sm:$0xf]
    %v191 = vld [vmem:[#allocation4 + $0xc0] sm:$0xf]
    %v192 = vld [vmem:[#allocation4 + $0xc4] sm:$0xf]
    %v193 = vld [vmem:[#allocation4 + $0xc8] sm:$0xf]
    %v194 = vld [vmem:[#allocation4 + $0xcc] sm:$0xf]
    %v195 = vld [vmem:[#allocation4 + $0xd0] sm:$0xf]
    %v196 = vld [vmem:[#allocation4 + $0xd4] sm:$0xf]
    %v197 = vld [vmem:[#allocation4 + $0xd8] sm:$0xf]
    %v198 = vld [vmem:[#allocation4 + $0xdc] sm:$0xf]
    %v199 = vld [vmem:[#allocation4 + $0xe0] sm:$0xf]
    %v200 = vld [vmem:[#allocation4 + $0xe4] sm:$0xf]
    %v201 = vld [vmem:[#allocation4 + $0xe8] sm:$0xf]
    %v202 = vld [vmem:[#allocation4 + $0xec] sm:$0xf]
    %v203 = vld [vmem:[#allocation4 + $0xf0] sm:$0xf]
    %v204 = vld [vmem:[#allocation4 + $0xf4] sm:$0xf]
    %v205 = vld [vmem:[#allocation4 + $0xf8] sm:$0xf]
    %v206 = vld [vmem:[#allocation4 + $0xfc] sm:$0xf]
    %v207 = vld [vmem:[%s2] sm:$0x1]
    %v209 = vlaneseq
    %v210 = vshrl.u32 %v209, 7
    %v211 = vsub.s32 0, %v210
    %v212 = vrot.slane %v207, %v211
    %v278 = vunpack.c.l.b16 %v143
    %v279 = vunpack.c.l.b16 %v144
    %v280 = vunpack.c.l.b16 %v145
    %v281 = vunpack.c.l.b16 %v146
    %v282 = vunpack.c.l.b16 %v147
    %v283 = vunpack.c.l.b16 %v148
    %v284 = vunpack.c.l.b16 %v149
    %v285 = vunpack.c.l.b16 %v150
    %v286 = vunpack.c.l.b16 %v151
    %v287 = vunpack.c.l.b16 %v152
    %v288 = vunpack.c.l.b16 %v153
    %v289 = vunpack.c.l.b16 %v154
    %v290 = vunpack.c.l.b16 %v155
    %v291 = vunpack.c.l.b16 %v156
    %v292 = vunpack.c.l.b16 %v157
    %v293 = vunpack.c.l.b16 %v158
    %v294 = vunpack.c.l.b16 %v159
    %v295 = vunpack.c.l.b16 %v160
    %v296 = vunpack.c.l.b16 %v161
    %v297 = vunpack.c.l.b16 %v162
    %v298 = vunpack.c.l.b16 %v163
    %v299 = vunpack.c.l.b16 %v164
    %v300 = vunpack.c.l.b16 %v165
    %v301 = vunpack.c.l.b16 %v166
    %v302 = vunpack.c.l.b16 %v167
    %v303 = vunpack.c.l.b16 %v168
    %v304 = vunpack.c.l.b16 %v169
    %v305 = vunpack.c.l.b16 %v170
    %v306 = vunpack.c.l.b16 %v171
    %v307 = vunpack.c.l.b16 %v172
    %v308 = vunpack.c.l.b16 %v173
    %v309 = vunpack.c.l.b16 %v174
    %v310 = vunpack.c.l.b16 %v175
    %v311 = vunpack.c.l.b16 %v176
    %v312 = vunpack.c.l.b16 %v177
    %v313 = vunpack.c.l.b16 %v178
    %v314 = vunpack.c.l.b16 %v179
    %v315 = vunpack.c.l.b16 %v180
    %v316 = vunpack.c.l.b16 %v181
    %v317 = vunpack.c.l.b16 %v182
    %v318 = vunpack.c.l.b16 %v183
    %v319 = vunpack.c.l.b16 %v184
    %v320 = vunpack.c.l.b16 %v185
    %v321 = vunpack.c.l.b16 %v186
    %v322 = vunpack.c.l.b16 %v187
    %v323 = vunpack.c.l.b16 %v188
    %v324 = vunpack.c.l.b16 %v189
    %v325 = vunpack.c.l.b16 %v190
    %v326 = vunpack.c.l.b16 %v191
    %v327 = vunpack.c.l.b16 %v192
    %v328 = vunpack.c.l.b16 %v193
    %v329 = vunpack.c.l.b16 %v194
    %v330 = vunpack.c.l.b16 %v195
    %v331 = vunpack.c.l.b16 %v196
    %v332 = vunpack.c.l.b16 %v197
    %v333 = vunpack.c.l.b16 %v198
    %v334 = vunpack.c.l.b16 %v199
    %v335 = vunpack.c.l.b16 %v200
    %v336 = vunpack.c.l.b16 %v201
    %v337 = vunpack.c.l.b16 %v202
    %v338 = vunpack.c.l.b16 %v203
    %v339 = vunpack.c.l.b16 %v204
    %v340 = vunpack.c.l.b16 %v205
    %v341 = vunpack.c.l.b16 %v206
    %v342 = vpack.c.b16 %v279, %v278
    %v343 = vpack.c.b16 %v281, %v280
    %v344 = vpack.c.b16 %v283, %v282
    %v345 = vpack.c.b16 %v285, %v284
    %v346 = vpack.c.b16 %v287, %v286
    %v347 = vpack.c.b16 %v289, %v288
    %v348 = vpack.c.b16 %v291, %v290
    %v349 = vpack.c.b16 %v293, %v292
    %v350 = vpack.c.b16 %v295, %v294
    %v351 = vpack.c.b16 %v297, %v296
    %v352 = vpack.c.b16 %v299, %v298
    %v353 = vpack.c.b16 %v301, %v300
    %v354 = vpack.c.b16 %v303, %v302
    %v355 = vpack.c.b16 %v305, %v304
    %v356 = vpack.c.b16 %v307, %v306
    %v357 = vpack.c.b16 %v309, %v308
    %v358 = vpack.c.b16 %v311, %v310
    %v359 = vpack.c.b16 %v313, %v312
    %v360 = vpack.c.b16 %v315, %v314
    %v361 = vpack.c.b16 %v317, %v316
    %v362 = vpack.c.b16 %v319, %v318
    %v363 = vpack.c.b16 %v321, %v320
    %v364 = vpack.c.b16 %v323, %v322
    %v365 = vpack.c.b16 %v325, %v324
    %v366 = vpack.c.b16 %v327, %v326
    %v367 = vpack.c.b16 %v329, %v328
    %v368 = vpack.c.b16 %v331, %v330
    %v369 = vpack.c.b16 %v333, %v332
    %v370 = vpack.c.b16 %v335, %v334
    %v371 = vpack.c.b16 %v337, %v336
    %v372 = vpack.c.b16 %v339, %v338
    %v373 = vpack.c.b16 %v341, %v340
    %406 = vmatprep.subr.bf16.mxu0 0
    %407 = vmatpush1.bf16.msra.mxu0 %v342
    %408 = vmatprep.subr.bf16.mxu0 0
    %409 = vmatpush1.bf16.msra.mxu0 %v343
    %410 = vmatprep.subr.bf16.mxu0 0
    %411 = vmatpush1.bf16.msra.mxu0 %v344
    %412 = vmatprep.subr.bf16.mxu0 0
    %413 = vmatpush1.bf16.msra.mxu0 %v345
    %414 = vmatprep.subr.bf16.mxu0 0
    %415 = vmatpush1.bf16.msra.mxu0 %v346
    %416 = vmatprep.subr.bf16.mxu0 0
    %417 = vmatpush1.bf16.msra.mxu0 %v347
    %418 = vmatprep.subr.bf16.mxu0 0
    %419 = vmatpush1.bf16.msra.mxu0 %v348
    %420 = vmatprep.subr.bf16.mxu0 0
    %421 = vmatpush1.bf16.msra.mxu0 %v349
    %422 = vmatprep.subr.bf16.mxu0 0
    %423 = vmatpush1.bf16.msra.mxu0 %v350
    %424 = vmatprep.subr.bf16.mxu0 0
    %425 = vmatpush1.bf16.msra.mxu0 %v351
    %426 = vmatprep.subr.bf16.mxu0 0
    %427 = vmatpush1.bf16.msra.mxu0 %v352
    %428 = vmatprep.subr.bf16.mxu0 0
    %429 = vmatpush1.bf16.msra.mxu0 %v353
    %430 = vmatprep.subr.bf16.mxu0 0
    %431 = vmatpush1.bf16.msra.mxu0 %v354
    %432 = vmatprep.subr.bf16.mxu0 0
    %433 = vmatpush1.bf16.msra.mxu0 %v355
    %434 = vmatprep.subr.bf16.mxu0 0
    %435 = vmatpush1.bf16.msra.mxu0 %v356
    %436 = vmatprep.subr.bf16.mxu0 0
    %437 = vmatpush1.bf16.msra.mxu0 %v357
    %438 = vmatprep.mubr.bf16.mxu0 %v140
    %439 = vmatmul.mubr.bf16.gmra.mrb[0].mxu0 %v139
    %v440 = vpop.f32.mrb[0].mxu0
    %v441 = vadd.f32 %v212, %v440
    %v442 = vpop.f32.mrb[0].mxu0
    %v443 = vpop.f32.mrb[0].mxu0
    %v444 = vadd.f32 %v212, %v443
    %v445 = vpop.f32.mrb[0].mxu0
    %446 = vdwg.mxu0
    %447 = vmatprep.subr.bf16.mxu0 0
    %448 = vmatpush1.bf16.msra.mxu0 %v358
    %449 = vmatprep.subr.bf16.mxu0 0
    %450 = vmatpush1.bf16.msra.mxu0 %v359
    %451 = vmatprep.subr.bf16.mxu0 0
    %452 = vmatpush1.bf16.msra.mxu0 %v360
    %453 = vmatprep.subr.bf16.mxu0 0
    %454 = vmatpush1.bf16.msra.mxu0 %v361
    %455 = vmatprep.subr.bf16.mxu0 0
    %456 = vmatpush1.bf16.msra.mxu0 %v362
    %457 = vmatprep.subr.bf16.mxu0 0
    %458 = vmatpush1.bf16.msra.mxu0 %v363
    %459 = vmatprep.subr.bf16.mxu0 0
    %460 = vmatpush1.bf16.msra.mxu0 %v364
    %461 = vmatprep.subr.bf16.mxu0 0
    %462 = vmatpush1.bf16.msra.mxu0 %v365
    %463 = vmatprep.subr.bf16.mxu0 0
    %464 = vmatpush1.bf16.msra.mxu0 %v366
    %465 = vmatprep.subr.bf16.mxu0 0
    %466 = vmatpush1.bf16.msra.mxu0 %v367
    %467 = vmatprep.subr.bf16.mxu0 0
    %468 = vmatpush1.bf16.msra.mxu0 %v368
    %469 = vmatprep.subr.bf16.mxu0 0
    %470 = vmatpush1.bf16.msra.mxu0 %v369
    %471 = vmatprep.subr.bf16.mxu0 0
    %472 = vmatpush1.bf16.msra.mxu0 %v370
    %473 = vmatprep.subr.bf16.mxu0 0
    %474 = vmatpush1.bf16.msra.mxu0 %v371
    %475 = vmatprep.subr.bf16.mxu0 0
    %476 = vmatpush1.bf16.msra.mxu0 %v372
    %477 = vmatprep.subr.bf16.mxu0 0
    %478 = vmatpush1.bf16.msra.mxu0 %v373
    %479 = vmatprep.mubr.bf16.mxu0 %v142
    %480 = vmatmul.mubr.bf16.gmra.mrb[0].mxu0 %v141
    %v481 = vpop.f32.mrb[0].mxu0
    %v482 = vadd.f32 %v441, %v481
    %v483 = vpop.f32.mrb[0].mxu0
    %v484 = vpop.f32.mrb[0].mxu0
    %v485 = vadd.f32 %v444, %v484
    %v486 = vpop.f32.mrb[0].mxu0
    %487 = vdwg.mxu0
    %v488 = vlaneseq
    %v489 = vand.u32 %v488, 127
    %vm490 = vcmp.ge.s32.totalorder %v489, 2
    %vm491 = vcmp.lt.s32.totalorder %v489, 102
    %vm492 = vmand %vm490, %vm491
    %v493 = vxor.u32 %v482, 2147483648
    %v494 = vxor.u32 %v485, 2147483648
    %v495 = vmul.f32 %v493, 1.442695
    %v496 = vpow.pop %v495
    %v497 = vmul.f32 %v494, 1.442695
    %v498 = vpow.pop %v497
    %v499 = vadd.f32 %v496, 1.0
    %v500 = vadd.f32 %v498, 1.0
    %v501 = vrcp.pop %v499
    %v502 = vmul.f32 1.0, %v501
    %v503 = vrcp.pop %v500
    %v504 = vmul.f32 1.0, %v503
    %v505 = vsel %vm492, %v502, %v482
    %v506 = vsel %vm492, %v504, %v485
    %507 = vst [vmem:[#allocation6] sm:$0xff] %v505
    %508 = vst [vmem:[#allocation6 + $0x8] sm:$0xff] %v506
    // Predicated region
    $region22: #{inception_v3_heads.1} parent=1 // pred_check
      _
    $region23: #{inception_v3_heads.1} parent=1 // pred_check_branch
      %510 = sbr.rel (0) target = $region25
    $region24: #{inception_v3_heads.1} parent=1 // pred_region
      // Predicated region
      $region26: #{inception_v3_heads.1} parent=24 // pred_check
        _
      $region27: #{inception_v3_heads.1} parent=24 // pred_check_branch
        %512 = sbr.rel (0) target = $region29
      $region28: #{inception_v3_heads.1} parent=24 // pred_region
        // Predicated region
        $region30: #{inception_v3_heads.1} parent=28 // pred_check
          _
        $region31: #{inception_v3_heads.1} parent=28 // pred_check_branch
          %514 = sbr.rel target = $region33
        $region32: #{inception_v3_heads.1} parent=28 // pred_region
          // Predicated region
          $region45: #{inception_v3_heads.1} parent=32 // pred_check
            _
          $region46: #{inception_v3_heads.1} parent=32 // pred_check_branch
            %529 = sbr.rel (0) target = $region48
          $region47: #{inception_v3_heads.1} parent=32 // pred_region
            loop: start=0, step=1, limit=1
            $region49: #{inception_v3_heads.1} parent=47 // loop_pre_header
              _
            $region50: #{inception_v3_heads.1} parent=47 // loop_header
              %s532 = sphi 0, %s536
              %p533 = scmp.ge.s32.totalorder %s532, 1
              %s537 = sphi [#allocation6], [#allocation6]
              %s538 = sphi %s3, %s3
            $region51: #{inception_v3_heads.1} parent=47 // loop_header_branch
              %535 = sbr.rel (%p533) target = $region55
            $region52: #{inception_v3_heads.1} parent=47 // loop_body
              %v539 = vld [vmem:[%s537] sm:$0x3]
              %540 = vst [vmem:[%s538] sm:$0x3] %v539
            $region53: #{inception_v3_heads.1} parent=47 // loop_footer
              %s536 = sadd.s32 1, %s532
            $region54: #{inception_v3_heads.1} parent=47 // loop_footer_branch
              %531 = sbr.rel target = $region50
            $region55: #{inception_v3_heads.1} parent=47 // loop_exit
              _
          $region48: #{inception_v3_heads.1} parent=32 // pred_fallthru
            _
        $region33: #{inception_v3_heads.1} parent=28 // pred_fallthru
          _
        // Predicated region
        $region34: #{inception_v3_heads.1} parent=28 // pred_check
          _
        $region35: #{inception_v3_heads.1} parent=28 // pred_check_branch
          %516 = sbr.rel (0) target = $region37
        $region36: #{inception_v3_heads.1} parent=28 // pred_region
          loop: start=0, step=1, limit=1
          $region38: #{inception_v3_heads.1} parent=36 // loop_pre_header
            _
          $region39: #{inception_v3_heads.1} parent=36 // loop_header
            %s519 = sphi 0, %s523
            %p520 = scmp.ge.s32.totalorder %s519, 1
            %s524 = sphi [#allocation6], [#allocation6]
            %s525 = sphi %s3, %s3
          $region40: #{inception_v3_heads.1} parent=36 // loop_header_branch
            %522 = sbr.rel (%p520) target = $region44
          $region41: #{inception_v3_heads.1} parent=36 // loop_body
            %v526 = vld [vmem:[%s524] sm:$0x3]
            %527 = vst [vmem:[%s525] sm:$0x3] %v526
          $region42: #{inception_v3_heads.1} parent=36 // loop_footer
            %s523 = sadd.s32 1, %s519
          $region43: #{inception_v3_heads.1} parent=36 // loop_footer_branch
            %518 = sbr.rel target = $region39
          $region44: #{inception_v3_heads.1} parent=36 // loop_exit
            _
        $region37: #{inception_v3_heads.1} parent=28 // pred_fallthru
          _
      $region29: #{inception_v3_heads.1} parent=24 // pred_fallthru
        _
      %541 = vnop
    $region25: #{inception_v3_heads.1} parent=1 // pred_fallthru
      _
    // Predicated region
    $region56: #{inception_v3_heads.1} parent=1 // pred_check
      _
    $region57: #{inception_v3_heads.1} parent=1 // pred_check_branch
      %543 = sbr.rel (0) target = $region59
    $region58: #{inception_v3_heads.1} parent=1 // pred_region
      _
    $region59: #{inception_v3_heads.1} parent=1 // pred_fallthru
      _
    %544 = vsyncpa [#allocation3], 1
    %545 = vsyncpa [#allocation5], 1

</llo_original>
